<compile_context>
chip_gen: v7x
topology: tpu7x:2x2x1
jax: 0.10.0
libtpu: 0.0.40
codegen_flags: <defaults>
</compile_context>

<pallas_src>
import functools
import re

import jax
import jax.numpy as jnp
from jax import lax
from jax.experimental import pallas as pl
from jax.experimental.pallas import tpu as pltpu

HIDDEN = 256


def _cdiv(a, b):
    return -(-a // b)


def _tpu_generation(default=6):
    """Best-effort TPU generation from device_kind ('TPU v5e' -> 5, ...)."""
    try:
        kind = jax.devices()[0].device_kind.lower()
    except Exception:
        return default
    m = re.search(r"(\d+)", kind)
    return int(m.group(1)) if m else default


def _qfunc_kernel(obs_ref, act_ref, w1o_ref, w1a_ref, b1_ref, w2_ref, b2_ref,
                  w3_ref, b3_ref, w4_ref, b4_ref, o_ref, *,
                  mm_dtype, ew_dtype, final_on_mxu):
    """Whole 4-layer MLP on one batch tile.

    obs_ref : (tb, obs_dim) f32        act_ref : (tb, act_dim) f32
    w1o_ref : (obs_dim, 256)           w1a_ref : (act_dim, 256)   (mm_dtype)
    w2/w3   : (256, 256) mm_dtype      b1/b2/b3: (1, 256) ew_dtype
    w4_ref  : (1, 256) mm_dtype (MXU path) or f32 (VPU path)
    b4_ref  : (1, 1) f32
    o_ref   : (1, tb // 128, 128) f32  -- lane-dense q values
    """
    obs = obs_ref[...].astype(mm_dtype)
    act = act_ref[...].astype(mm_dtype)

    # Layer 1: split contraction (no feature padding / concat needed).
    h = jnp.dot(obs, w1o_ref[...], preferred_element_type=jnp.float32)
    h = h + jnp.dot(act, w1a_ref[...], preferred_element_type=jnp.float32)
    h = jnp.maximum(h.astype(ew_dtype) + b1_ref[...], 0.0)

    # Layers 2-3.
    h = jnp.dot(h.astype(mm_dtype), w2_ref[...],
                preferred_element_type=jnp.float32)
    h = jnp.maximum(h.astype(ew_dtype) + b2_ref[...], 0.0)
    h = jnp.dot(h.astype(mm_dtype), w3_ref[...],
                preferred_element_type=jnp.float32)
    h = jnp.maximum(h.astype(ew_dtype) + b3_ref[...], 0.0)

    # Layer 4: Linear(256 -> 1).
    if final_on_mxu:
        # MXU dot contracting the 256 feature dim; result (1, tb) is already
        # lane-dense, so only a cheap lane-preserving reshape remains.
        q = lax.dot_general(w4_ref[...], h.astype(w4_ref.dtype),
                            (((1,), (1,)), ((), ())),
                            preferred_element_type=jnp.float32)   # (1, tb)
        q = q + b4_ref[...]
    else:
        # v5e: keep the 1-wide output off the (binding) MXU; VPU mul + XLU
        # lane reduce, then relayout to lane-dense.
        q = jnp.sum(h.astype(jnp.float32) * w4_ref[...], axis=-1,
                    keepdims=True) + b4_ref[...]                   # (tb, 1)
    o_ref[...] = q.reshape(o_ref.shape).astype(o_ref.dtype)


def _mlp_pallas(obs, act, params, *, tile_b=1024, use_bf16=True):
    """obs: (N, obs_dim) f32, act: (N, act_dim) f32 -> (N,) f32 q-values."""
    w1, b1, w2, b2, w3, b3, w4, b4 = params
    n, obs_dim = obs.shape
    act_dim = act.shape[1]

    gen = _tpu_generation()
    mm_dtype = jnp.bfloat16 if use_bf16 else jnp.float32
    # bf16 elementwise only where the VPU supports it (v6e / v7x).
    ew_dtype = jnp.bfloat16 if (use_bf16 and gen >= 6) else jnp.float32
    final_on_mxu = gen >= 6

    # Split w1 so obs / act can be DMA'd directly (no concat, no 23->128 pad).
    w1o = w1[:obs_dim].astype(mm_dtype)
    w1a = w1[obs_dim:].astype(mm_dtype)
    w2c = w2.astype(mm_dtype)
    w3c = w3.astype(mm_dtype)
    b1c = b1.reshape(1, HIDDEN).astype(ew_dtype)
    b2c = b2.reshape(1, HIDDEN).astype(ew_dtype)
    b3c = b3.reshape(1, HIDDEN).astype(ew_dtype)
    w4c = w4.reshape(1, HIDDEN).astype(mm_dtype if final_on_mxu
                                       else jnp.float32)
    b4c = b4.reshape(1, 1).astype(jnp.float32)

    # Batch tiling: minimal step count, padding < steps*128 rows; >=2 steps on
    # v7x so both TensorCores are fed via the "parallel" grid axis.
    units = _cdiv(max(n, 1), 128)
    max_units = max(1, tile_b // 128)
    steps = _cdiv(units, max_units)
    if gen >= 7 and units >= 2:
        steps = max(steps, 2)
    tb_units = _cdiv(units, steps)
    tb = tb_units * 128
    n_pad = steps * tb
    if n_pad != n:
        obs = jnp.pad(obs, ((0, n_pad - n), (0, 0)))
        act = jnp.pad(act, ((0, n_pad - n), (0, 0)))

    kernel = functools.partial(_qfunc_kernel, mm_dtype=mm_dtype,
                               ew_dtype=ew_dtype, final_on_mxu=final_on_mxu)
    full = lambda a: pl.BlockSpec(a.shape, lambda i: (0,) * a.ndim)

    out = pl.pallas_call(
        kernel,
        out_shape=jax.ShapeDtypeStruct((steps, tb_units, 128), jnp.float32),
        grid_spec=pltpu.PrefetchScalarGridSpec(
            num_scalar_prefetch=0,
            grid=(steps,),
            in_specs=[
                pl.BlockSpec((tb, obs_dim), lambda i: (i, 0)),   # obs tile
                pl.BlockSpec((tb, act_dim), lambda i: (i, 0)),   # act tile
                full(w1o), full(w1a), full(b1c),
                full(w2c), full(b2c),
                full(w3c), full(b3c),
                full(w4c), full(b4c),
            ],
            out_specs=pl.BlockSpec((1, tb_units, 128), lambda i: (i, 0, 0)),
        ),
        compiler_params=pltpu.CompilerParams(
            dimension_semantics=("parallel",)),
    )(obs, act, w1o, w1a, b1c, w2c, b2c, w3c, b3c, w4c, b4c)

    return out.reshape(-1)[:n]


def init_q_params(key, observation_dim, action_dim, n_hidden_layers=3):
    """Synthetic init mirroring the module's layer shapes.
    Hidden layers: uniform(-1/sqrt(fan_in), 1/sqrt(fan_in)) like nn.Linear
    default; last layer: xavier_uniform with gain 0.01, bias 0."""
    d_in = observation_dim + action_dim
    dims = [d_in] + [HIDDEN] * n_hidden_layers + [1]
    params = []
    for li in range(len(dims) - 1):
        fan_in, fan_out = dims[li], dims[li + 1]
        key, kw = jax.random.split(key)
        if li == len(dims) - 2:
            bound = 0.01 * jnp.sqrt(6.0 / (fan_in + fan_out))
            w = jax.random.uniform(kw, (fan_in, fan_out), jnp.float32,
                                   -bound, bound)
            b = jnp.zeros((1, fan_out), jnp.float32)
        else:
            bound = 1.0 / jnp.sqrt(fan_in)
            w = jax.random.uniform(kw, (fan_in, fan_out), jnp.float32,
                                   -bound, bound)
            key, kb = jax.random.split(key)
            b = jax.random.uniform(kb, (1, fan_out), jnp.float32,
                                   -bound, bound)
        params += [w, b]
    return tuple(params)


@functools.partial(jax.jit, static_argnames=("use_bf16", "tile_b"))
def fully_connected_q_forward(observations, actions, params, *,
                              use_bf16=True, tile_b=1024):
    """Mirrors FullyConnectedQFunction.forward.

    observations: (B, obs_dim)
    actions:      (B, act_dim)        -> returns (B,)
                  (B, A, act_dim) 3-D -> returns (B, A)
    """
    multiple_actions = actions.ndim == 3 and observations.ndim == 2
    batch_size = observations.shape[0]
    if multiple_actions:
        n_act = actions.shape[1]
        # TODO(synk): obs broadcast is still materialized once in HBM
        # (B*A*obs_dim floats); a fully index-map-based gather would need an
        # action grid axis + non-rectangular obs tiles.
        obs_flat = jnp.broadcast_to(
            observations[:, None, :],
            (batch_size, n_act, observations.shape[-1]),
        ).reshape(batch_size * n_act, observations.shape[-1])
        act_flat = actions.reshape(batch_size * n_act, actions.shape[-1])
    else:
        obs_flat, act_flat = observations, actions

    q = _mlp_pallas(obs_flat, act_flat, params,
                    tile_b=tile_b, use_bf16=use_bf16)            # (N,)

    if multiple_actions:
        q = q.reshape(batch_size, -1)
    return q


def _reference(observations, actions, params):
    """Plain-JAX f32 reference for correctness checks."""
    multiple_actions = actions.ndim == 3
    b = observations.shape[0]
    if multiple_actions:
        obs = jnp.repeat(observations[:, None, :], actions.shape[1], axis=1)
        obs = obs.reshape(-1, observations.shape[-1])
        act = actions.reshape(-1, actions.shape[-1])
    else:
        obs, act = observations, actions
    h = jnp.concatenate([obs, act], axis=-1)
    w1, b1, w2, b2, w3, b3, w4, b4 = params
    h = jnp.maximum(h @ w1 + b1, 0.0)
    h = jnp.maximum(h @ w2 + b2, 0.0)
    h = jnp.maximum(h @ w3 + b3, 0.0)
    q = (h @ w4 + b4)[:, 0]
    if multiple_actions:
        q = q.reshape(b, -1)
    return q


if __name__ == "__main__":
    obs_dim, act_dim = 17, 6
    batch, n_sampled_actions = 2, 8

    key = jax.random.PRNGKey(0)
    kp, ko, ka, ka3, ko2, ka2 = jax.random.split(key, 6)

    params = init_q_params(kp, obs_dim, act_dim, n_hidden_layers=3)

    observations = jax.random.normal(ko, (batch, obs_dim), jnp.float32)
    actions_2d = jax.random.normal(ka, (batch, act_dim), jnp.float32)
    actions_3d = jax.random.normal(ka3, (batch, n_sampled_actions, act_dim),
                                   jnp.float32)

    # single-action path: (B,) output
    q2 = jax.block_until_ready(
        fully_connected_q_forward(observations, actions_2d, params))
    assert q2.shape == (batch,), q2.shape

    # multiple-actions path: (B, A) output
    q3 = jax.block_until_ready(
        fully_connected_q_forward(observations, actions_3d, params))
    assert q3.shape == (batch, n_sampled_actions), q3.shape

    # multi-tile path: N = 40*8 = 320 rows with tile_b=128 -> >=3 grid steps,
    # exercises batch padding + lane-dense multi-block output.
    obs_big = jax.random.normal(ko2, (40, obs_dim), jnp.float32)
    act_big = jax.random.normal(ka2, (40, n_sampled_actions, act_dim),
                                jnp.float32)
    qb = jax.block_until_ready(
        fully_connected_q_forward(obs_big, act_big, params, tile_b=128))
    assert qb.shape == (40, n_sampled_actions), qb.shape

    # correctness vs f32 reference (bf16 matmuls -> loosened tolerance)
    r2 = _reference(observations, actions_2d, params)
    r3 = _reference(observations, actions_3d, params)
    rb = _reference(obs_big, act_big, params)
    assert jnp.allclose(q2, r2, atol=5e-3, rtol=5e-2)
    assert jnp.allclose(q3, r3, atol=5e-3, rtol=5e-2)
    assert jnp.allclose(qb, rb, atol=5e-3, rtol=5e-2)

    # near-exact semantics with the f32 path
    q2f = jax.block_until_ready(
        fully_connected_q_forward(observations, actions_2d, params,
                                  use_bf16=False))
    assert jnp.allclose(q2f, r2, atol=1e-4, rtol=1e-4)

    print("KERNEL_OK")
</pallas_src>

<mosaic_0001>
module attributes {stable_mosaic.version = 11 : i64} {
  func.func @_qfunc_kernel(%arg0: i32, %arg1: memref<128x17xf32, #tpu.memory_space<vmem>>, %arg2: memref<128x6xf32, #tpu.memory_space<vmem>>, %arg3: memref<17x256xbf16, #tpu.memory_space<vmem>>, %arg4: memref<6x256xbf16, #tpu.memory_space<vmem>>, %arg5: memref<1x256xbf16, #tpu.memory_space<vmem>>, %arg6: memref<256x256xbf16, #tpu.memory_space<vmem>>, %arg7: memref<1x256xbf16, #tpu.memory_space<vmem>>, %arg8: memref<256x256xbf16, #tpu.memory_space<vmem>>, %arg9: memref<1x256xbf16, #tpu.memory_space<vmem>>, %arg10: memref<1x256xbf16, #tpu.memory_space<vmem>>, %arg11: memref<1x1xf32, #tpu.memory_space<vmem>>, %arg12: memref<1x1x128xf32, #tpu.memory_space<vmem>>) attributes {dimension_semantics = [#tpu.dimension_semantics<parallel>], iteration_bounds = array<i64: 1>, scalar_prefetch = 0 : i64, scratch_operands = 0 : i64, tpu.core_type = #tpu.core_type<tc>, window_params = [{transform_indices = @transform_0, window_bounds = array<i64: 128, 17>}, {transform_indices = @transform_1, window_bounds = array<i64: 128, 6>}, {pipeline_mode = #tpu.pipeline_mode<synchronous>, transform_indices = @transform_2, window_bounds = array<i64: 17, 256>}, {pipeline_mode = #tpu.pipeline_mode<synchronous>, transform_indices = @transform_3, window_bounds = array<i64: 6, 256>}, {pipeline_mode = #tpu.pipeline_mode<synchronous>, transform_indices = @transform_4, window_bounds = array<i64: 1, 256>}, {pipeline_mode = #tpu.pipeline_mode<synchronous>, transform_indices = @transform_5, window_bounds = array<i64: 256, 256>}, {pipeline_mode = #tpu.pipeline_mode<synchronous>, transform_indices = @transform_6, window_bounds = array<i64: 1, 256>}, {pipeline_mode = #tpu.pipeline_mode<synchronous>, transform_indices = @transform_7, window_bounds = array<i64: 256, 256>}, {pipeline_mode = #tpu.pipeline_mode<synchronous>, transform_indices = @transform_8, window_bounds = array<i64: 1, 256>}, {pipeline_mode = #tpu.pipeline_mode<synchronous>, transform_indices = @transform_9, window_bounds = array<i64: 1, 256>}, {pipeline_mode = #tpu.pipeline_mode<synchronous>, transform_indices = @transform_10, window_bounds = array<i64: 1, 1>}, {transform_indices = @transform_11, window_bounds = array<i64: 1, 1, 128>}]} {
    %c0 = arith.constant 0 : index
    %c0_0 = arith.constant 0 : index
    %0 = vector.load %arg1[%c0, %c0_0] : memref<128x17xf32, #tpu.memory_space<vmem>>, vector<128x17xf32>
    %1 = arith.truncf %0 : vector<128x17xf32> to vector<128x17xbf16>
    %c0_1 = arith.constant 0 : index
    %c0_2 = arith.constant 0 : index
    %2 = vector.load %arg2[%c0_1, %c0_2] : memref<128x6xf32, #tpu.memory_space<vmem>>, vector<128x6xf32>
    %3 = arith.truncf %2 : vector<128x6xf32> to vector<128x6xbf16>
    %c0_3 = arith.constant 0 : index
    %c0_4 = arith.constant 0 : index
    %4 = vector.load %arg3[%c0_3, %c0_4] : memref<17x256xbf16, #tpu.memory_space<vmem>>, vector<17x256xbf16>
    %cst = arith.constant dense<0.000000e+00> : vector<128x256xf32>
    %5 = tpu.matmul %1, %4, %cst {dimension_numbers = #tpu.dot_dimension_numbers<[1], [0], [0], [1], [0, 0, 1, 1], [], []>} : vector<128x17xbf16>, vector<17x256xbf16>, vector<128x256xf32> -> vector<128x256xf32>
    %c0_5 = arith.constant 0 : index
    %c0_6 = arith.constant 0 : index
    %6 = vector.load %arg4[%c0_5, %c0_6] : memref<6x256xbf16, #tpu.memory_space<vmem>>, vector<6x256xbf16>
    %cst_7 = arith.constant dense<0.000000e+00> : vector<128x256xf32>
    %7 = tpu.matmul %3, %6, %cst_7 {dimension_numbers = #tpu.dot_dimension_numbers<[1], [0], [0], [1], [0, 0, 1, 1], [], []>} : vector<128x6xbf16>, vector<6x256xbf16>, vector<128x256xf32> -> vector<128x256xf32>
    %8 = arith.addf %5, %7 : vector<128x256xf32>
    %9 = arith.truncf %8 : vector<128x256xf32> to vector<128x256xbf16>
    %c0_8 = arith.constant 0 : index
    %c0_9 = arith.constant 0 : index
    %10 = vector.load %arg5[%c0_8, %c0_9] : memref<1x256xbf16, #tpu.memory_space<vmem>>, vector<1x256xbf16>
    %11 = vector.broadcast %10 : vector<1x256xbf16> to vector<128x256xbf16>
    %12 = arith.addf %9, %11 : vector<128x256xbf16>
    %cst_10 = arith.constant 0.000000e+00 : bf16
    %13 = vector.broadcast %cst_10 : bf16 to vector<128x256xbf16>
    %14 = arith.maximumf %12, %13 : vector<128x256xbf16>
    %c0_11 = arith.constant 0 : index
    %c0_12 = arith.constant 0 : index
    %15 = vector.load %arg6[%c0_11, %c0_12] : memref<256x256xbf16, #tpu.memory_space<vmem>>, vector<256x256xbf16>
    %cst_13 = arith.constant dense<0.000000e+00> : vector<128x256xf32>
    %16 = tpu.matmul %14, %15, %cst_13 {dimension_numbers = #tpu.dot_dimension_numbers<[1], [0], [0], [1], [0, 0, 1, 1], [], []>} : vector<128x256xbf16>, vector<256x256xbf16>, vector<128x256xf32> -> vector<128x256xf32>
    %17 = arith.truncf %16 : vector<128x256xf32> to vector<128x256xbf16>
    %c0_14 = arith.constant 0 : index
    %c0_15 = arith.constant 0 : index
    %18 = vector.load %arg7[%c0_14, %c0_15] : memref<1x256xbf16, #tpu.memory_space<vmem>>, vector<1x256xbf16>
    %19 = vector.broadcast %18 : vector<1x256xbf16> to vector<128x256xbf16>
    %20 = arith.addf %17, %19 : vector<128x256xbf16>
    %cst_16 = arith.constant 0.000000e+00 : bf16
    %21 = vector.broadcast %cst_16 : bf16 to vector<128x256xbf16>
    %22 = arith.maximumf %20, %21 : vector<128x256xbf16>
    %c0_17 = arith.constant 0 : index
    %c0_18 = arith.constant 0 : index
    %23 = vector.load %arg8[%c0_17, %c0_18] : memref<256x256xbf16, #tpu.memory_space<vmem>>, vector<256x256xbf16>
    %cst_19 = arith.constant dense<0.000000e+00> : vector<128x256xf32>
    %24 = tpu.matmul %22, %23, %cst_19 {dimension_numbers = #tpu.dot_dimension_numbers<[1], [0], [0], [1], [0, 0, 1, 1], [], []>} : vector<128x256xbf16>, vector<256x256xbf16>, vector<128x256xf32> -> vector<128x256xf32>
    %25 = arith.truncf %24 : vector<128x256xf32> to vector<128x256xbf16>
    %c0_20 = arith.constant 0 : index
    %c0_21 = arith.constant 0 : index
    %26 = vector.load %arg9[%c0_20, %c0_21] : memref<1x256xbf16, #tpu.memory_space<vmem>>, vector<1x256xbf16>
    %27 = vector.broadcast %26 : vector<1x256xbf16> to vector<128x256xbf16>
    %28 = arith.addf %25, %27 : vector<128x256xbf16>
    %cst_22 = arith.constant 0.000000e+00 : bf16
    %29 = vector.broadcast %cst_22 : bf16 to vector<128x256xbf16>
    %30 = arith.maximumf %28, %29 : vector<128x256xbf16>
    %c0_23 = arith.constant 0 : index
    %c0_24 = arith.constant 0 : index
    %31 = vector.load %arg10[%c0_23, %c0_24] : memref<1x256xbf16, #tpu.memory_space<vmem>>, vector<1x256xbf16>
    %cst_25 = arith.constant dense<0.000000e+00> : vector<1x128xf32>
    %32 = tpu.matmul %31, %30, %cst_25 {dimension_numbers = #tpu.dot_dimension_numbers<[1], [1], [0], [0], [0, 0, 1, 0], [], []>} : vector<1x256xbf16>, vector<128x256xbf16>, vector<1x128xf32> -> vector<1x128xf32>
    %c0_26 = arith.constant 0 : index
    %c0_27 = arith.constant 0 : index
    %33 = vector.load %arg11[%c0_26, %c0_27] : memref<1x1xf32, #tpu.memory_space<vmem>>, vector<1x1xf32>
    %34 = vector.broadcast %33 : vector<1x1xf32> to vector<1x128xf32>
    %35 = arith.addf %32, %34 : vector<1x128xf32>
    %36 = vector.shape_cast %35 : vector<1x128xf32> to vector<1x1x128xf32>
    %c0_28 = arith.constant 0 : index
    %c0_29 = arith.constant 0 : index
    %c0_30 = arith.constant 0 : index
    %37 = vector.load %arg12[%c0_28, %c0_29, %c0_30] : memref<1x1x128xf32, #tpu.memory_space<vmem>>, vector<1x1x128xf32>
    tpu.vector_store %arg12[%c0_28, %c0_29, %c0_30], %36 {strides = array<i32>} : memref<1x1x128xf32, #tpu.memory_space<vmem>>, vector<1x1x128xf32>,
    return
  }
  func.func @transform_0(%arg0: i32) -> (i32, i32) {
    %c0_i32 = arith.constant 0 : i32
    %c0_i32_0 = arith.constant 0 : i32
    return %arg0, %c0_i32 : i32, i32
  }
  func.func @transform_1(%arg0: i32) -> (i32, i32) {
    %c0_i32 = arith.constant 0 : i32
    %c0_i32_0 = arith.constant 0 : i32
    return %arg0, %c0_i32 : i32, i32
  }
  func.func @transform_2(%arg0: i32) -> (i32, i32) {
    %c0_i32 = arith.constant 0 : i32
    %c0_i32_0 = arith.constant 0 : i32
    %c0_i32_1 = arith.constant 0 : i32
    return %c0_i32, %c0_i32_0 : i32, i32
  }
  func.func @transform_3(%arg0: i32) -> (i32, i32) {
    %c0_i32 = arith.constant 0 : i32
    %c0_i32_0 = arith.constant 0 : i32
    %c0_i32_1 = arith.constant 0 : i32
    return %c0_i32, %c0_i32_0 : i32, i32
  }
  func.func @transform_4(%arg0: i32) -> (i32, i32) {
    %c0_i32 = arith.constant 0 : i32
    %c0_i32_0 = arith.constant 0 : i32
    %c0_i32_1 = arith.constant 0 : i32
    return %c0_i32, %c0_i32_0 : i32, i32
  }
  func.func @transform_5(%arg0: i32) -> (i32, i32) {
    %c0_i32 = arith.constant 0 : i32
    %c0_i32_0 = arith.constant 0 : i32
    %c0_i32_1 = arith.constant 0 : i32
    return %c0_i32, %c0_i32_0 : i32, i32
  }
  func.func @transform_6(%arg0: i32) -> (i32, i32) {
    %c0_i32 = arith.constant 0 : i32
    %c0_i32_0 = arith.constant 0 : i32
    %c0_i32_1 = arith.constant 0 : i32
    return %c0_i32, %c0_i32_0 : i32, i32
  }
  func.func @transform_7(%arg0: i32) -> (i32, i32) {
    %c0_i32 = arith.constant 0 : i32
    %c0_i32_0 = arith.constant 0 : i32
    %c0_i32_1 = arith.constant 0 : i32
    return %c0_i32, %c0_i32_0 : i32, i32
  }
  func.func @transform_8(%arg0: i32) -> (i32, i32) {
    %c0_i32 = arith.constant 0 : i32
    %c0_i32_0 = arith.constant 0 : i32
    %c0_i32_1 = arith.constant 0 : i32
    return %c0_i32, %c0_i32_0 : i32, i32
  }
  func.func @transform_9(%arg0: i32) -> (i32, i32) {
    %c0_i32 = arith.constant 0 : i32
    %c0_i32_0 = arith.constant 0 : i32
    %c0_i32_1 = arith.constant 0 : i32
    return %c0_i32, %c0_i32_0 : i32, i32
  }
  func.func @transform_10(%arg0: i32) -> (i32, i32) {
    %c0_i32 = arith.constant 0 : i32
    %c0_i32_0 = arith.constant 0 : i32
    %c0_i32_1 = arith.constant 0 : i32
    return %c0_i32, %c0_i32_0 : i32, i32
  }
  func.func @transform_11(%arg0: i32) -> (i32, i32, i32) {
    %c0_i32 = arith.constant 0 : i32
    %c0_i32_0 = arith.constant 0 : i32
    %c0_i32_1 = arith.constant 0 : i32
    return %arg0, %c0_i32, %c0_i32_0 : i32, i32, i32
  }
}

</mosaic_0001>

<llo_original>
// kernel: fully_connected_q_forward.1
$region0: #{fully_connected_q_forward.1}
  #allocation0 [shape = 'u32[]', space=smem, size = 0x4, offset = 0x4, fixed_abs, tag = 'smem constant byte address 0x4 - core index']
  #allocation1 [shape = 'u32[144,128]{1,0:T(1,128)}', space=vmem, size = 0x12000, scoped, tag = 'internal scratch']
  #allocation2 [shape = 'f32[1,1]{1,0:T(1,128)S(1)}', space=vmem, size = 0x200, scoped, tag = 'scoped memory for fully_connected_q_forward.1']
  %s0 = inlined_call_operand.vmem [shape: f32[128,17], index: 0, kind: input, shape index: {}]
  %s1 = inlined_call_operand.vmem [shape: f32[128,6], index: 1, kind: input, shape index: {}]
  %s2 = inlined_call_operand.vmem [shape: bf16[17,256], index: 2, kind: input, shape index: {}]
  %s3 = inlined_call_operand.vmem [shape: bf16[6,256], index: 3, kind: input, shape index: {}]
  %s4 = inlined_call_operand.vmem [shape: bf16[1,256], index: 4, kind: input, shape index: {}]
  %s5 = inlined_call_operand.vmem [shape: bf16[256,256], index: 5, kind: input, shape index: {}]
  %s6 = inlined_call_operand.vmem [shape: bf16[1,256], index: 6, kind: input, shape index: {}]
  %s7 = inlined_call_operand.vmem [shape: bf16[256,256], index: 7, kind: input, shape index: {}]
  %s8 = inlined_call_operand.vmem [shape: bf16[1,256], index: 8, kind: input, shape index: {}]
  %s9 = inlined_call_operand.vmem [shape: bf16[1,256], index: 9, kind: input, shape index: {}]
  %s10 = inlined_call_operand.<no memory space> [shape: f32[1,1], index: 10, kind: input, shape index: {}]
  %s11 = inlined_call_operand.vmem [shape: f32[1,1,128], index: 11, kind: output, shape index: {}]
  %s12 = sld [smem:[#allocation0]]
  $region54: #{fully_connected_q_forward.1} parent=0
    _
  %s14 = ssub.s32 1, %s12
  %s15 = scalar_select 0, %s14, %s12
  %v16 = vstv %s10
  %17 = vst [vmem:[#allocation2] sm:$0x1] %v16
  // Predicated region
  $region2: #{fully_connected_q_forward.1} parent=0 // pred_check
    _
  $region3: #{fully_connected_q_forward.1} parent=0 // pred_check_branch
    %19 = sbr.rel (0) target = $region5
  $region4: #{fully_connected_q_forward.1} parent=0 // pred_region
    _
  $region5: #{fully_connected_q_forward.1} parent=0 // pred_fallthru
    _
  // Predicated region
  $region6: #{fully_connected_q_forward.1} parent=0 // pred_check
    _
  $region7: #{fully_connected_q_forward.1} parent=0 // pred_check_branch
    %21 = sbr.rel (0) target = $region9
  $region8: #{fully_connected_q_forward.1} parent=0 // pred_region
    _
  $region9: #{fully_connected_q_forward.1} parent=0 // pred_fallthru
    _
  // Predicated region
  $region10: #{fully_connected_q_forward.1} parent=0 // pred_check
    _
  $region11: #{fully_connected_q_forward.1} parent=0 // pred_check_branch
    %23 = sbr.rel (0) target = $region13
  $region12: #{fully_connected_q_forward.1} parent=0 // pred_region
    _
  $region13: #{fully_connected_q_forward.1} parent=0 // pred_fallthru
    _
  // Predicated region
  $region14: #{fully_connected_q_forward.1} parent=0 // pred_check
    _
  $region15: #{fully_connected_q_forward.1} parent=0 // pred_check_branch
    %25 = sbr.rel (0) target = $region17
  $region16: #{fully_connected_q_forward.1} parent=0 // pred_region
    _
  $region17: #{fully_connected_q_forward.1} parent=0 // pred_fallthru
    _
  // Predicated region
  $region18: #{fully_connected_q_forward.1} parent=0 // pred_check
    _
  $region19: #{fully_connected_q_forward.1} parent=0 // pred_check_branch
    %27 = sbr.rel (0) target = $region21
  $region20: #{fully_connected_q_forward.1} parent=0 // pred_region
    _
  $region21: #{fully_connected_q_forward.1} parent=0 // pred_fallthru
    _
  // Predicated region
  $region22: #{fully_connected_q_forward.1} parent=0 // pred_check
    _
  $region23: #{fully_connected_q_forward.1} parent=0 // pred_check_branch
    %29 = sbr.rel (0) target = $region25
  $region24: #{fully_connected_q_forward.1} parent=0 // pred_region
    _
  $region25: #{fully_connected_q_forward.1} parent=0 // pred_fallthru
    _
  // Predicated region
  $region26: #{fully_connected_q_forward.1} parent=0 // pred_check
    _
  $region27: #{fully_connected_q_forward.1} parent=0 // pred_check_branch
    %31 = sbr.rel (0) target = $region29
  $region28: #{fully_connected_q_forward.1} parent=0 // pred_region
    _
  $region29: #{fully_connected_q_forward.1} parent=0 // pred_fallthru
    _
  // Predicated region
  $region30: #{fully_connected_q_forward.1} parent=0 // pred_check
    _
  $region31: #{fully_connected_q_forward.1} parent=0 // pred_check_branch
    %33 = sbr.rel (0) target = $region33
  $region32: #{fully_connected_q_forward.1} parent=0 // pred_region
    _
  $region33: #{fully_connected_q_forward.1} parent=0 // pred_fallthru
    _
  // Predicated region
  $region34: #{fully_connected_q_forward.1} parent=0 // pred_check
    _
  $region35: #{fully_connected_q_forward.1} parent=0 // pred_check_branch
    %35 = sbr.rel (0) target = $region37
  $region36: #{fully_connected_q_forward.1} parent=0 // pred_region
    _
  $region37: #{fully_connected_q_forward.1} parent=0 // pred_fallthru
    _
  // Predicated region
  $region38: #{fully_connected_q_forward.1} parent=0 // pred_check
    _
  $region39: #{fully_connected_q_forward.1} parent=0 // pred_check_branch
    %37 = sbr.rel (0) target = $region41
  $region40: #{fully_connected_q_forward.1} parent=0 // pred_region
    _
  $region41: #{fully_connected_q_forward.1} parent=0 // pred_fallthru
    _
  // Predicated region
  $region42: #{fully_connected_q_forward.1} parent=0 // pred_check
    _
  $region43: #{fully_connected_q_forward.1} parent=0 // pred_check_branch
    %39 = sbr.rel (0) target = $region45
  $region44: #{fully_connected_q_forward.1} parent=0 // pred_region
    _
  $region45: #{fully_connected_q_forward.1} parent=0 // pred_fallthru
    _
  %v41 = vld [vmem:[%s0] sm:$0xff]
  %v42 = vld [vmem:[%s0 + $0x8] sm:$0xff]
  %v43 = vld [vmem:[%s0 + $0x10] sm:$0xff]
  %v44 = vld [vmem:[%s0 + $0x18] sm:$0xff]
  %v45 = vld [vmem:[%s0 + $0x20] sm:$0xff]
  %v46 = vld [vmem:[%s0 + $0x28] sm:$0xff]
  %v47 = vld [vmem:[%s0 + $0x30] sm:$0xff]
  %v48 = vld [vmem:[%s0 + $0x38] sm:$0xff]
  %v49 = vld [vmem:[%s0 + $0x40] sm:$0xff]
  %v50 = vld [vmem:[%s0 + $0x48] sm:$0xff]
  %v51 = vld [vmem:[%s0 + $0x50] sm:$0xff]
  %v52 = vld [vmem:[%s0 + $0x58] sm:$0xff]
  %v53 = vld [vmem:[%s0 + $0x60] sm:$0xff]
  %v54 = vld [vmem:[%s0 + $0x68] sm:$0xff]
  %v55 = vld [vmem:[%s0 + $0x70] sm:$0xff]
  %v56 = vld [vmem:[%s0 + $0x78] sm:$0xff]
  %v57 = vpack.c.bf16 %v42, %v41
  %v58 = vpack.c.bf16 %v44, %v43
  %v59 = vpack.c.bf16 %v46, %v45
  %v60 = vpack.c.bf16 %v48, %v47
  %v61 = vpack.c.bf16 %v50, %v49
  %v62 = vpack.c.bf16 %v52, %v51
  %v63 = vpack.c.bf16 %v54, %v53
  %v64 = vpack.c.bf16 %v56, %v55
  %v65 = vld [vmem:[%s1] sm:$0xff]
  %v66 = vld [vmem:[%s1 + $0x8] sm:$0xff]
  %v67 = vld [vmem:[%s1 + $0x10] sm:$0xff]
  %v68 = vld [vmem:[%s1 + $0x18] sm:$0xff]
  %v69 = vld [vmem:[%s1 + $0x20] sm:$0xff]
  %v70 = vld [vmem:[%s1 + $0x28] sm:$0xff]
  %v71 = vld [vmem:[%s1 + $0x30] sm:$0xff]
  %v72 = vld [vmem:[%s1 + $0x38] sm:$0xff]
  %v73 = vld [vmem:[%s1 + $0x40] sm:$0xff]
  %v74 = vld [vmem:[%s1 + $0x48] sm:$0xff]
  %v75 = vld [vmem:[%s1 + $0x50] sm:$0xff]
  %v76 = vld [vmem:[%s1 + $0x58] sm:$0xff]
  %v77 = vld [vmem:[%s1 + $0x60] sm:$0xff]
  %v78 = vld [vmem:[%s1 + $0x68] sm:$0xff]
  %v79 = vld [vmem:[%s1 + $0x70] sm:$0xff]
  %v80 = vld [vmem:[%s1 + $0x78] sm:$0xff]
  %v81 = vpack.c.bf16 %v66, %v65
  %v82 = vpack.c.bf16 %v68, %v67
  %v83 = vpack.c.bf16 %v70, %v69
  %v84 = vpack.c.bf16 %v72, %v71
  %v85 = vpack.c.bf16 %v74, %v73
  %v86 = vpack.c.bf16 %v76, %v75
  %v87 = vpack.c.bf16 %v78, %v77
  %v88 = vpack.c.bf16 %v80, %v79
  %v89 = vld [vmem:[%s2] sm:$0xff]
  %v90 = vld [vmem:[%s2 + $0x8] sm:$0xff]
  %v91 = vld [vmem:[%s2 + $0x10] sm:$0x11]
  %v92 = vld [vmem:[%s3] sm:$0x77]
  %v94 = vunpack.c.l.b16 %v92
  %v95 = vunpack.c.h.b16 %v92
  %v96 = vpack.c.b16 %v94, %v94
  %v97 = vpack.c.b16 %v95, %v95
  %vm98 = vcmask 48128
  %v100 = vsel %vm98, %v81, 0
  %v103 = vsel %vm98, %v82, 0
  %v106 = vsel %vm98, %v83, 0
  %v109 = vsel %vm98, %v84, 0
  %v112 = vsel %vm98, %v85, 0
  %v115 = vsel %vm98, %v86, 0
  %v118 = vsel %vm98, %v87, 0
  %v121 = vsel %vm98, %v88, 0
  %vm123 = vcmask 1042432
  %v125 = vsel %vm123, %v96, 0
  %v128 = vsel %vm123, %v97, 0
  %130 = vmatprep.subr.bf16.mxu0 %v128
  %131 = vmatpush1.bf16.msra.mxu0 %v125
  %132 = vmatprep.subr.bf16.mxu0 0
  %133 = vmatpush1.bf16.msra.mxu0 0
  %134 = vmatprep.subr.bf16.mxu0 0
  %135 = vmatpush1.bf16.msra.mxu0 0
  %136 = vmatprep.subr.bf16.mxu0 0
  %137 = vmatpush1.bf16.msra.mxu0 0
  %138 = vmatprep.subr.bf16.mxu0 0
  %139 = vmatpush1.bf16.msra.mxu0 0
  %140 = vmatprep.subr.bf16.mxu0 0
  %141 = vmatpush1.bf16.msra.mxu0 0
  %142 = vmatprep.subr.bf16.mxu0 0
  %143 = vmatpush1.bf16.msra.mxu0 0
  %144 = vmatprep.subr.bf16.mxu0 0
  %145 = vmatpush1.bf16.msra.mxu0 0
  %146 = vmatprep.subr.bf16.mxu0 0
  %147 = vmatpush1.bf16.msra.mxu0 0
  %148 = vmatprep.subr.bf16.mxu0 0
  %149 = vmatpush1.bf16.msra.mxu0 0
  %150 = vmatprep.subr.bf16.mxu0 0
  %151 = vmatpush1.bf16.msra.mxu0 0
  %152 = vmatprep.subr.bf16.mxu0 0
  %153 = vmatpush1.bf16.msra.mxu0 0
  %154 = vmatprep.subr.bf16.mxu0 0
  %155 = vmatpush1.bf16.msra.mxu0 0
  %156 = vmatprep.subr.bf16.mxu0 0
  %157 = vmatpush1.bf16.msra.mxu0 0
  %158 = vmatprep.subr.bf16.mxu0 0
  %159 = vmatpush1.bf16.msra.mxu0 0
  %160 = vmatprep.subr.bf16.mxu0 0
  %161 = vmatpush1.bf16.msra.mxu0 0
  %162 = vmatprep.mubr.bf16.mxu0 0
  %163 = vmatmul.mubr.bf16.gmra.mrb[0].mxu0 %v100
  %v164 = vpop.f32.mrb[0].mxu0
  %v165 = vadd.f32 0.0, %v164
  %v166 = vpop.f32.mrb[0].mxu0
  %v167 = vadd.f32 0.0, %v166
  %v168 = vpop.f32.mrb[0].mxu0
  %v169 = vadd.f32 0.0, %v168
  %v170 = vpop.f32.mrb[0].mxu0
  %v171 = vadd.f32 0.0, %v170
  %172 = vmatprep.mubr.bf16.mxu0 0
  %173 = vmatmul.mubr.bf16.gmra.mrb[0].mxu0 %v103
  %v174 = vpop.f32.mrb[0].mxu0
  %v175 = vadd.f32 0.0, %v174
  %v176 = vpop.f32.mrb[0].mxu0
  %v177 = vadd.f32 0.0, %v176
  %v178 = vpop.f32.mrb[0].mxu0
  %v179 = vadd.f32 0.0, %v178
  %v180 = vpop.f32.mrb[0].mxu0
  %v181 = vadd.f32 0.0, %v180
  %182 = vmatprep.mubr.bf16.mxu0 0
  %183 = vmatmul.mubr.bf16.gmra.mrb[0].mxu0 %v106
  %v184 = vpop.f32.mrb[0].mxu0
  %v185 = vadd.f32 0.0, %v184
  %v186 = vpop.f32.mrb[0].mxu0
  %v187 = vadd.f32 0.0, %v186
  %v188 = vpop.f32.mrb[0].mxu0
  %v189 = vadd.f32 0.0, %v188
  %v190 = vpop.f32.mrb[0].mxu0
  %v191 = vadd.f32 0.0, %v190
  %192 = vmatprep.mubr.bf16.mxu0 0
  %193 = vmatmul.mubr.bf16.gmra.mrb[0].mxu0 %v109
  %v194 = vpop.f32.mrb[0].mxu0
  %v195 = vadd.f32 0.0, %v194
  %v196 = vpop.f32.mrb[0].mxu0
  %v197 = vadd.f32 0.0, %v196
  %v198 = vpop.f32.mrb[0].mxu0
  %v199 = vadd.f32 0.0, %v198
  %v200 = vpop.f32.mrb[0].mxu0
  %v201 = vadd.f32 0.0, %v200
  %202 = vmatprep.mubr.bf16.mxu0 0
  %203 = vmatmul.mubr.bf16.gmra.mrb[0].mxu0 %v112
  %v204 = vpop.f32.mrb[0].mxu0
  %v205 = vadd.f32 0.0, %v204
  %v206 = vpop.f32.mrb[0].mxu0
  %v207 = vadd.f32 0.0, %v206
  %v208 = vpop.f32.mrb[0].mxu0
  %v209 = vadd.f32 0.0, %v208
  %v210 = vpop.f32.mrb[0].mxu0
  %v211 = vadd.f32 0.0, %v210
  %212 = vmatprep.mubr.bf16.mxu0 0
  %213 = vmatmul.mubr.bf16.gmra.mrb[0].mxu0 %v115
  %v214 = vpop.f32.mrb[0].mxu0
  %v215 = vadd.f32 0.0, %v214
  %v216 = vpop.f32.mrb[0].mxu0
  %v217 = vadd.f32 0.0, %v216
  %v218 = vpop.f32.mrb[0].mxu0
  %v219 = vadd.f32 0.0, %v218
  %v220 = vpop.f32.mrb[0].mxu0
  %v221 = vadd.f32 0.0, %v220
  %222 = vmatprep.mubr.bf16.mxu0 0
  %223 = vmatmul.mubr.bf16.gmra.mrb[0].mxu0 %v118
  %v224 = vpop.f32.mrb[0].mxu0
  %v225 = vadd.f32 0.0, %v224
  %v226 = vpop.f32.mrb[0].mxu0
  %v227 = vadd.f32 0.0, %v226
  %v228 = vpop.f32.mrb[0].mxu0
  %v229 = vadd.f32 0.0, %v228
  %v230 = vpop.f32.mrb[0].mxu0
  %v231 = vadd.f32 0.0, %v230
  %232 = vmatprep.mubr.bf16.mxu0 0
  %233 = vmatmul.mubr.bf16.gmra.mrb[0].mxu0 %v121
  %v234 = vpop.f32.mrb[0].mxu0
  %v235 = vadd.f32 0.0, %v234
  %v236 = vpop.f32.mrb[0].mxu0
  %v237 = vadd.f32 0.0, %v236
  %v238 = vpop.f32.mrb[0].mxu0
  %v239 = vadd.f32 0.0, %v238
  %v240 = vpop.f32.mrb[0].mxu0
  %v241 = vadd.f32 0.0, %v240
  %242 = vdwg.mxu0
  %v246 = vunpack.c.l.b16 %v89
  %v247 = vunpack.c.h.b16 %v89
  %v248 = vunpack.c.l.b16 %v90
  %v249 = vunpack.c.h.b16 %v90
  %v250 = vunpack.c.l.b16 %v91
  %v251 = vunpack.c.h.b16 %v91
  %v252 = vpack.c.b16 %v248, %v246
  %v253 = vpack.c.b16 %v249, %v247
  %v254 = vpack.c.b16 %v250, %v250
  %v255 = vpack.c.b16 %v251, %v251
  %vm258 = vcmask 138240
  %v260 = vsel %vm258, %v57, 0
  %v263 = vsel %vm258, %v58, 0
  %v266 = vsel %vm258, %v59, 0
  %v269 = vsel %vm258, %v60, 0
  %v272 = vsel %vm258, %v61, 0
  %v275 = vsel %vm258, %v62, 0
  %v278 = vsel %vm258, %v63, 0
  %v281 = vsel %vm258, %v64, 0
  %vm283 = vcmask 1040384
  %v284 = vsel 0, 4294967295, 65535
  %v285 = vsel %vm283, %v284, 0
  %v287 = vand.u32 %v254, %v285
  %v290 = vand.u32 %v255, %v285
  %292 = vmatprep.subr.bf16.mxu0 %v253
  %293 = vmatpush1.bf16.msra.mxu0 %v252
  %294 = vmatprep.subr.bf16.mxu0 %v290
  %295 = vmatpush1.bf16.msra.mxu0 %v287
  %296 = vmatprep.subr.bf16.mxu0 0
  %297 = vmatpush1.bf16.msra.mxu0 0
  %298 = vmatprep.subr.bf16.mxu0 0
  %299 = vmatpush1.bf16.msra.mxu0 0
  %300 = vmatprep.subr.bf16.mxu0 0
  %301 = vmatpush1.bf16.msra.mxu0 0
  %302 = vmatprep.subr.bf16.mxu0 0
  %303 = vmatpush1.bf16.msra.mxu0 0
  %304 = vmatprep.subr.bf16.mxu0 0
  %305 = vmatpush1.bf16.msra.mxu0 0
  %306 = vmatprep.subr.bf16.mxu0 0
  %307 = vmatpush1.bf16.msra.mxu0 0
  %308 = vmatprep.subr.bf16.mxu0 0
  %309 = vmatpush1.bf16.msra.mxu0 0
  %310 = vmatprep.subr.bf16.mxu0 0
  %311 = vmatpush1.bf16.msra.mxu0 0
  %312 = vmatprep.subr.bf16.mxu0 0
  %313 = vmatpush1.bf16.msra.mxu0 0
  %314 = vmatprep.subr.bf16.mxu0 0
  %315 = vmatpush1.bf16.msra.mxu0 0
  %316 = vmatprep.subr.bf16.mxu0 0
  %317 = vmatpush1.bf16.msra.mxu0 0
  %318 = vmatprep.subr.bf16.mxu0 0
  %319 = vmatpush1.bf16.msra.mxu0 0
  %320 = vmatprep.subr.bf16.mxu0 0
  %321 = vmatpush1.bf16.msra.mxu0 0
  %322 = vmatprep.subr.bf16.mxu0 0
  %323 = vmatpush1.bf16.msra.mxu0 0
  %324 = vmatprep.mubr.bf16.mxu0 0
  %325 = vmatmul.mubr.bf16.gmra.mrb[0].mxu0 %v260
  %v326 = vpop.f32.mrb[0].mxu0
  %v327 = vadd.f32 %v165, %v326
  %v328 = vpop.f32.mrb[0].mxu0
  %v329 = vadd.f32 %v167, %v328
  %v330 = vpop.f32.mrb[0].mxu0
  %v331 = vadd.f32 %v169, %v330
  %v332 = vpop.f32.mrb[0].mxu0
  %v333 = vadd.f32 %v171, %v332
  %334 = vmatprep.mubr.bf16.mxu0 0
  %335 = vmatmul.mubr.bf16.gmra.mrb[0].mxu0 %v263
  %v336 = vpop.f32.mrb[0].mxu0
  %v337 = vadd.f32 %v175, %v336
  %v338 = vpop.f32.mrb[0].mxu0
  %v339 = vadd.f32 %v177, %v338
  %v340 = vpop.f32.mrb[0].mxu0
  %v341 = vadd.f32 %v179, %v340
  %v342 = vpop.f32.mrb[0].mxu0
  %v343 = vadd.f32 %v181, %v342
  %344 = vmatprep.mubr.bf16.mxu0 0
  %345 = vmatmul.mubr.bf16.gmra.mrb[0].mxu0 %v266
  %v346 = vpop.f32.mrb[0].mxu0
  %v347 = vadd.f32 %v185, %v346
  %v348 = vpop.f32.mrb[0].mxu0
  %v349 = vadd.f32 %v187, %v348
  %v350 = vpop.f32.mrb[0].mxu0
  %v351 = vadd.f32 %v189, %v350
  %v352 = vpop.f32.mrb[0].mxu0
  %v353 = vadd.f32 %v191, %v352
  %354 = vmatprep.mubr.bf16.mxu0 0
  %355 = vmatmul.mubr.bf16.gmra.mrb[0].mxu0 %v269
  %v356 = vpop.f32.mrb[0].mxu0
  %v357 = vadd.f32 %v195, %v356
  %v358 = vpop.f32.mrb[0].mxu0
  %v359 = vadd.f32 %v197, %v358
  %v360 = vpop.f32.mrb[0].mxu0
  %v361 = vadd.f32 %v199, %v360
  %v362 = vpop.f32.mrb[0].mxu0
  %v363 = vadd.f32 %v201, %v362
  %364 = vmatprep.mubr.bf16.mxu0 0
  %365 = vmatmul.mubr.bf16.gmra.mrb[0].mxu0 %v272
  %v366 = vpop.f32.mrb[0].mxu0
  %v367 = vadd.f32 %v205, %v366
  %v368 = vpop.f32.mrb[0].mxu0
  %v369 = vadd.f32 %v207, %v368
  %v370 = vpop.f32.mrb[0].mxu0
  %v371 = vadd.f32 %v209, %v370
  %v372 = vpop.f32.mrb[0].mxu0
  %v373 = vadd.f32 %v211, %v372
  %374 = vmatprep.mubr.bf16.mxu0 0
  %375 = vmatmul.mubr.bf16.gmra.mrb[0].mxu0 %v275
  %v376 = vpop.f32.mrb[0].mxu0
  %v377 = vadd.f32 %v215, %v376
  %v378 = vpop.f32.mrb[0].mxu0
  %v379 = vadd.f32 %v217, %v378
  %v380 = vpop.f32.mrb[0].mxu0
  %v381 = vadd.f32 %v219, %v380
  %v382 = vpop.f32.mrb[0].mxu0
  %v383 = vadd.f32 %v221, %v382
  %384 = vmatprep.mubr.bf16.mxu0 0
  %385 = vmatmul.mubr.bf16.gmra.mrb[0].mxu0 %v278
  %v386 = vpop.f32.mrb[0].mxu0
  %v387 = vadd.f32 %v225, %v386
  %v388 = vpop.f32.mrb[0].mxu0
  %v389 = vadd.f32 %v227, %v388
  %v390 = vpop.f32.mrb[0].mxu0
  %v391 = vadd.f32 %v229, %v390
  %v392 = vpop.f32.mrb[0].mxu0
  %v393 = vadd.f32 %v231, %v392
  %394 = vmatprep.mubr.bf16.mxu0 0
  %395 = vmatmul.mubr.bf16.gmra.mrb[0].mxu0 %v281
  %v396 = vpop.f32.mrb[0].mxu0
  %v397 = vadd.f32 %v235, %v396
  %v398 = vpop.f32.mrb[0].mxu0
  %v399 = vadd.f32 %v237, %v398
  %v400 = vpop.f32.mrb[0].mxu0
  %v401 = vadd.f32 %v239, %v400
  %v402 = vpop.f32.mrb[0].mxu0
  %v403 = vadd.f32 %v241, %v402
  %404 = vdwg.mxu0
  %v405 = vpack.c.bf16 %v331, %v327
  %v406 = vpack.c.bf16 %v333, %v329
  %v407 = vpack.c.bf16 %v341, %v337
  %v408 = vpack.c.bf16 %v343, %v339
  %v409 = vpack.c.bf16 %v351, %v347
  %v410 = vpack.c.bf16 %v353, %v349
  %v411 = vpack.c.bf16 %v361, %v357
  %v412 = vpack.c.bf16 %v363, %v359
  %v413 = vpack.c.bf16 %v371, %v367
  %v414 = vpack.c.bf16 %v373, %v369
  %v415 = vpack.c.bf16 %v381, %v377
  %v416 = vpack.c.bf16 %v383, %v379
  %v417 = vpack.c.bf16 %v391, %v387
  %v418 = vpack.c.bf16 %v393, %v389
  %v419 = vpack.c.bf16 %v401, %v397
  %v420 = vpack.c.bf16 %v403, %v399
  %v421 = vld [vmem:[%s4] sm:$0x3]
  %v424 = vunpack.c.l.s4 1966171168
  %v425 = vunpack.c.0.s8 %v424
  %v426 = vlaneseq
  %v427 = vshrl.u32 %v426, 7
  %v428 = vsub.s32 %v425, %v427
  %v429 = vrot.slane %v421, %v428
  %v430 = vcombine.high %v429, %v429
  %v432 = vunpack.c.l.s4 1966171168
  %v433 = vunpack.c.0.s8 %v432
  %v434 = vlaneseq
  %v435 = vshrl.u32 %v434, 7
  %v436 = vsub.s32 %v433, %v435
  %v437 = vrot.slane %v429, %v436
  %v439 = vunpack.c.l.s4 1966171168
  %v440 = vunpack.c.0.s8 %v439
  %v441 = vlaneseq
  %v442 = vshrl.u32 %v441, 7
  %v443 = vsub.s32 %v440, %v442
  %v444 = vrot.slane %v430, %v443
  %v446 = vpack.i.b16 %v437, %v437
  %v448 = vlaneseq
  %v449 = vshrl.u32 %v448, 7
  %v450 = vsub.s32 0, %v449
  %v451 = vrot.slane %v446, %v450
  %v453 = vpack.i.b16 %v444, %v444
  %v455 = vlaneseq
  %v456 = vshrl.u32 %v455, 7
  %v457 = vsub.s32 0, %v456
  %v458 = vrot.slane %v453, %v457
  %v459 = vadd.bf16 %v405, %v451
  %v460 = vadd.bf16 %v406, %v458
  %v461 = vadd.bf16 %v407, %v451
  %v462 = vadd.bf16 %v408, %v458
  %v463 = vadd.bf16 %v409, %v451
  %v464 = vadd.bf16 %v410, %v458
  %v465 = vadd.bf16 %v411, %v451
  %v466 = vadd.bf16 %v412, %v458
  %v467 = vadd.bf16 %v413, %v451
  %v468 = vadd.bf16 %v414, %v458
  %v469 = vadd.bf16 %v415, %v451
  %v470 = vadd.bf16 %v416, %v458
  %v471 = vadd.bf16 %v417, %v451
  %v472 = vadd.bf16 %v418, %v458
  %v473 = vadd.bf16 %v419, %v451
  %v474 = vadd.bf16 %v420, %v458
  %v475 = vmax.bf16 %v459, 0
  %v476 = vmax.bf16 %v460, 0
  %v477 = vmax.bf16 %v461, 0
  %v478 = vmax.bf16 %v462, 0
  %v479 = vmax.bf16 %v463, 0
  %v480 = vmax.bf16 %v464, 0
  %v481 = vmax.bf16 %v465, 0
  %v482 = vmax.bf16 %v466, 0
  %v483 = vmax.bf16 %v467, 0
  %v484 = vmax.bf16 %v468, 0
  %v485 = vmax.bf16 %v469, 0
  %v486 = vmax.bf16 %v470, 0
  %v487 = vmax.bf16 %v471, 0
  %v488 = vmax.bf16 %v472, 0
  %v489 = vmax.bf16 %v473, 0
  %v490 = vmax.bf16 %v474, 0
  %v491 = vld [vmem:[%s5] sm:$0xff]
  %v492 = vld [vmem:[%s5 + $0x8] sm:$0xff]
  %v493 = vld [vmem:[%s5 + $0x10] sm:$0xff]
  %v494 = vld [vmem:[%s5 + $0x18] sm:$0xff]
  %v495 = vld [vmem:[%s5 + $0x20] sm:$0xff]
  %v496 = vld [vmem:[%s5 + $0x28] sm:$0xff]
  %v497 = vld [vmem:[%s5 + $0x30] sm:$0xff]
  %v498 = vld [vmem:[%s5 + $0x38] sm:$0xff]
  %v499 = vld [vmem:[%s5 + $0x40] sm:$0xff]
  %v500 = vld [vmem:[%s5 + $0x48] sm:$0xff]
  %v501 = vld [vmem:[%s5 + $0x50] sm:$0xff]
  %v502 = vld [vmem:[%s5 + $0x58] sm:$0xff]
  %v503 = vld [vmem:[%s5 + $0x60] sm:$0xff]
  %v504 = vld [vmem:[%s5 + $0x68] sm:$0xff]
  %v505 = vld [vmem:[%s5 + $0x70] sm:$0xff]
  %v506 = vld [vmem:[%s5 + $0x78] sm:$0xff]
  %v507 = vld [vmem:[%s5 + $0x80] sm:$0xff]
  %v508 = vld [vmem:[%s5 + $0x88] sm:$0xff]
  %v509 = vld [vmem:[%s5 + $0x90] sm:$0xff]
  %v510 = vld [vmem:[%s5 + $0x98] sm:$0xff]
  %v511 = vld [vmem:[%s5 + $0xa0] sm:$0xff]
  %v512 = vld [vmem:[%s5 + $0xa8] sm:$0xff]
  %v513 = vld [vmem:[%s5 + $0xb0] sm:$0xff]
  %v514 = vld [vmem:[%s5 + $0xb8] sm:$0xff]
  %v515 = vld [vmem:[%s5 + $0xc0] sm:$0xff]
  %v516 = vld [vmem:[%s5 + $0xc8] sm:$0xff]
  %v517 = vld [vmem:[%s5 + $0xd0] sm:$0xff]
  %v518 = vld [vmem:[%s5 + $0xd8] sm:$0xff]
  %v519 = vld [vmem:[%s5 + $0xe0] sm:$0xff]
  %v520 = vld [vmem:[%s5 + $0xe8] sm:$0xff]
  %v521 = vld [vmem:[%s5 + $0xf0] sm:$0xff]
  %v522 = vld [vmem:[%s5 + $0xf8] sm:$0xff]
  %v555 = vunpack.c.l.b16 %v491
  %v556 = vunpack.c.h.b16 %v491
  %v557 = vunpack.c.l.b16 %v492
  %v558 = vunpack.c.h.b16 %v492
  %v559 = vunpack.c.l.b16 %v493
  %v560 = vunpack.c.h.b16 %v493
  %v561 = vunpack.c.l.b16 %v494
  %v562 = vunpack.c.h.b16 %v494
  %v563 = vunpack.c.l.b16 %v495
  %v564 = vunpack.c.h.b16 %v495
  %v565 = vunpack.c.l.b16 %v496
  %v566 = vunpack.c.h.b16 %v496
  %v567 = vunpack.c.l.b16 %v497
  %v568 = vunpack.c.h.b16 %v497
  %v569 = vunpack.c.l.b16 %v498
  %v570 = vunpack.c.h.b16 %v498
  %v571 = vunpack.c.l.b16 %v499
  %v572 = vunpack.c.h.b16 %v499
  %v573 = vunpack.c.l.b16 %v500
  %v574 = vunpack.c.h.b16 %v500
  %v575 = vunpack.c.l.b16 %v501
  %v576 = vunpack.c.h.b16 %v501
  %v577 = vunpack.c.l.b16 %v502
  %v578 = vunpack.c.h.b16 %v502
  %v579 = vunpack.c.l.b16 %v503
  %v580 = vunpack.c.h.b16 %v503
  %v581 = vunpack.c.l.b16 %v504
  %v582 = vunpack.c.h.b16 %v504
  %v583 = vunpack.c.l.b16 %v505
  %v584 = vunpack.c.h.b16 %v505
  %v585 = vunpack.c.l.b16 %v506
  %v586 = vunpack.c.h.b16 %v506
  %v587 = vunpack.c.l.b16 %v507
  %v588 = vunpack.c.h.b16 %v507
  %v589 = vunpack.c.l.b16 %v508
  %v590 = vunpack.c.h.b16 %v508
  %v591 = vunpack.c.l.b16 %v509
  %v592 = vunpack.c.h.b16 %v509
  %v593 = vunpack.c.l.b16 %v510
  %v594 = vunpack.c.h.b16 %v510
  %v595 = vunpack.c.l.b16 %v511
  %v596 = vunpack.c.h.b16 %v511
  %v597 = vunpack.c.l.b16 %v512
  %v598 = vunpack.c.h.b16 %v512
  %v599 = vunpack.c.l.b16 %v513
  %v600 = vunpack.c.h.b16 %v513
  %v601 = vunpack.c.l.b16 %v514
  %v602 = vunpack.c.h.b16 %v514
  %v603 = vunpack.c.l.b16 %v515
  %v604 = vunpack.c.h.b16 %v515
  %v605 = vunpack.c.l.b16 %v516
  %v606 = vunpack.c.h.b16 %v516
  %v607 = vunpack.c.l.b16 %v517
  %v608 = vunpack.c.h.b16 %v517
  %v609 = vunpack.c.l.b16 %v518
  %v610 = vunpack.c.h.b16 %v518
  %v611 = vunpack.c.l.b16 %v519
  %v612 = vunpack.c.h.b16 %v519
  %v613 = vunpack.c.l.b16 %v520
  %v614 = vunpack.c.h.b16 %v520
  %v615 = vunpack.c.l.b16 %v521
  %v616 = vunpack.c.h.b16 %v521
  %v617 = vunpack.c.l.b16 %v522
  %v618 = vunpack.c.h.b16 %v522
  %v619 = vpack.c.b16 %v557, %v555
  %v620 = vpack.c.b16 %v558, %v556
  %v621 = vpack.c.b16 %v561, %v559
  %v622 = vpack.c.b16 %v562, %v560
  %v623 = vpack.c.b16 %v565, %v563
  %v624 = vpack.c.b16 %v566, %v564
  %v625 = vpack.c.b16 %v569, %v567
  %v626 = vpack.c.b16 %v570, %v568
  %v627 = vpack.c.b16 %v573, %v571
  %v628 = vpack.c.b16 %v574, %v572
  %v629 = vpack.c.b16 %v577, %v575
  %v630 = vpack.c.b16 %v578, %v576
  %v631 = vpack.c.b16 %v581, %v579
  %v632 = vpack.c.b16 %v582, %v580
  %v633 = vpack.c.b16 %v585, %v583
  %v634 = vpack.c.b16 %v586, %v584
  %v635 = vpack.c.b16 %v589, %v587
  %v636 = vpack.c.b16 %v590, %v588
  %v637 = vpack.c.b16 %v593, %v591
  %v638 = vpack.c.b16 %v594, %v592
  %v639 = vpack.c.b16 %v597, %v595
  %v640 = vpack.c.b16 %v598, %v596
  %v641 = vpack.c.b16 %v601, %v599
  %v642 = vpack.c.b16 %v602, %v600
  %v643 = vpack.c.b16 %v605, %v603
  %v644 = vpack.c.b16 %v606, %v604
  %v645 = vpack.c.b16 %v609, %v607
  %v646 = vpack.c.b16 %v610, %v608
  %v647 = vpack.c.b16 %v613, %v611
  %v648 = vpack.c.b16 %v614, %v612
  %v649 = vpack.c.b16 %v617, %v615
  %v650 = vpack.c.b16 %v618, %v616
  %683 = vmatprep.subr.bf16.mxu0 %v620
  %684 = vmatpush1.bf16.msra.mxu0 %v619
  %685 = vmatprep.subr.bf16.mxu0 %v622
  %686 = vmatpush1.bf16.msra.mxu0 %v621
  %687 = vmatprep.subr.bf16.mxu0 %v624
  %688 = vmatpush1.bf16.msra.mxu0 %v623
  %689 = vmatprep.subr.bf16.mxu0 %v626
  %690 = vmatpush1.bf16.msra.mxu0 %v625
  %691 = vmatprep.subr.bf16.mxu0 %v628
  %692 = vmatpush1.bf16.msra.mxu0 %v627
  %693 = vmatprep.subr.bf16.mxu0 %v630
  %694 = vmatpush1.bf16.msra.mxu0 %v629
  %695 = vmatprep.subr.bf16.mxu0 %v632
  %696 = vmatpush1.bf16.msra.mxu0 %v631
  %697 = vmatprep.subr.bf16.mxu0 %v634
  %698 = vmatpush1.bf16.msra.mxu0 %v633
  %699 = vmatprep.subr.bf16.mxu0 %v636
  %700 = vmatpush1.bf16.msra.mxu0 %v635
  %701 = vmatprep.subr.bf16.mxu0 %v638
  %702 = vmatpush1.bf16.msra.mxu0 %v637
  %703 = vmatprep.subr.bf16.mxu0 %v640
  %704 = vmatpush1.bf16.msra.mxu0 %v639
  %705 = vmatprep.subr.bf16.mxu0 %v642
  %706 = vmatpush1.bf16.msra.mxu0 %v641
  %707 = vmatprep.subr.bf16.mxu0 %v644
  %708 = vmatpush1.bf16.msra.mxu0 %v643
  %709 = vmatprep.subr.bf16.mxu0 %v646
  %710 = vmatpush1.bf16.msra.mxu0 %v645
  %711 = vmatprep.subr.bf16.mxu0 %v648
  %712 = vmatpush1.bf16.msra.mxu0 %v647
  %713 = vmatprep.subr.bf16.mxu0 %v650
  %714 = vmatpush1.bf16.msra.mxu0 %v649
  %715 = vmatprep.mubr.bf16.mxu0 %v476
  %716 = vmatmul.mubr.bf16.gmra.mrb[0].mxu0 %v475
  %v717 = vpop.f32.mrb[0].mxu0
  %v718 = vadd.f32 0.0, %v717
  %v719 = vpop.f32.mrb[0].mxu0
  %v720 = vadd.f32 0.0, %v719
  %v721 = vpop.f32.mrb[0].mxu0
  %v722 = vadd.f32 0.0, %v721
  %v723 = vpop.f32.mrb[0].mxu0
  %v724 = vadd.f32 0.0, %v723
  %725 = vmatprep.mubr.bf16.mxu0 %v478
  %726 = vmatmul.mubr.bf16.gmra.mrb[0].mxu0 %v477
  %v727 = vpop.f32.mrb[0].mxu0
  %v728 = vadd.f32 0.0, %v727
  %v729 = vpop.f32.mrb[0].mxu0
  %v730 = vadd.f32 0.0, %v729
  %v731 = vpop.f32.mrb[0].mxu0
  %v732 = vadd.f32 0.0, %v731
  %v733 = vpop.f32.mrb[0].mxu0
  %v734 = vadd.f32 0.0, %v733
  %735 = vmatprep.mubr.bf16.mxu0 %v480
  %736 = vmatmul.mubr.bf16.gmra.mrb[0].mxu0 %v479
  %v737 = vpop.f32.mrb[0].mxu0
  %v738 = vadd.f32 0.0, %v737
  %v739 = vpop.f32.mrb[0].mxu0
  %v740 = vadd.f32 0.0, %v739
  %v741 = vpop.f32.mrb[0].mxu0
  %v742 = vadd.f32 0.0, %v741
  %v743 = vpop.f32.mrb[0].mxu0
  %v744 = vadd.f32 0.0, %v743
  %745 = vmatprep.mubr.bf16.mxu0 %v482
  %746 = vmatmul.mubr.bf16.gmra.mrb[0].mxu0 %v481
  %v747 = vpop.f32.mrb[0].mxu0
  %v748 = vadd.f32 0.0, %v747
  %v749 = vpop.f32.mrb[0].mxu0
  %v750 = vadd.f32 0.0, %v749
  %v751 = vpop.f32.mrb[0].mxu0
  %v752 = vadd.f32 0.0, %v751
  %v753 = vpop.f32.mrb[0].mxu0
  %v754 = vadd.f32 0.0, %v753
  %755 = vmatprep.mubr.bf16.mxu0 %v484
  %756 = vmatmul.mubr.bf16.gmra.mrb[0].mxu0 %v483
  %v757 = vpop.f32.mrb[0].mxu0
  %v758 = vadd.f32 0.0, %v757
  %v759 = vpop.f32.mrb[0].mxu0
  %v760 = vadd.f32 0.0, %v759
  %v761 = vpop.f32.mrb[0].mxu0
  %v762 = vadd.f32 0.0, %v761
  %v763 = vpop.f32.mrb[0].mxu0
  %v764 = vadd.f32 0.0, %v763
  %765 = vmatprep.mubr.bf16.mxu0 %v486
  %766 = vmatmul.mubr.bf16.gmra.mrb[0].mxu0 %v485
  %v767 = vpop.f32.mrb[0].mxu0
  %v768 = vadd.f32 0.0, %v767
  %v769 = vpop.f32.mrb[0].mxu0
  %v770 = vadd.f32 0.0, %v769
  %v771 = vpop.f32.mrb[0].mxu0
  %v772 = vadd.f32 0.0, %v771
  %v773 = vpop.f32.mrb[0].mxu0
  %v774 = vadd.f32 0.0, %v773
  %775 = vmatprep.mubr.bf16.mxu0 %v488
  %776 = vmatmul.mubr.bf16.gmra.mrb[0].mxu0 %v487
  %v777 = vpop.f32.mrb[0].mxu0
  %v778 = vadd.f32 0.0, %v777
  %v779 = vpop.f32.mrb[0].mxu0
  %v780 = vadd.f32 0.0, %v779
  %v781 = vpop.f32.mrb[0].mxu0
  %v782 = vadd.f32 0.0, %v781
  %v783 = vpop.f32.mrb[0].mxu0
  %v784 = vadd.f32 0.0, %v783
  %785 = vmatprep.mubr.bf16.mxu0 %v490
  %786 = vmatmul.mubr.bf16.gmra.mrb[0].mxu0 %v489
  %v787 = vpop.f32.mrb[0].mxu0
  %v788 = vadd.f32 0.0, %v787
  %v789 = vpop.f32.mrb[0].mxu0
  %v790 = vadd.f32 0.0, %v789
  %v791 = vpop.f32.mrb[0].mxu0
  %v792 = vadd.f32 0.0, %v791
  %v793 = vpop.f32.mrb[0].mxu0
  %v794 = vadd.f32 0.0, %v793
  %795 = vdwg.mxu0
  %v796 = vpack.c.bf16 %v722, %v718
  %v797 = vpack.c.bf16 %v724, %v720
  %v798 = vpack.c.bf16 %v732, %v728
  %v799 = vpack.c.bf16 %v734, %v730
  %v800 = vpack.c.bf16 %v742, %v738
  %v801 = vpack.c.bf16 %v744, %v740
  %v802 = vpack.c.bf16 %v752, %v748
  %v803 = vpack.c.bf16 %v754, %v750
  %v804 = vpack.c.bf16 %v762, %v758
  %v805 = vpack.c.bf16 %v764, %v760
  %v806 = vpack.c.bf16 %v772, %v768
  %v807 = vpack.c.bf16 %v774, %v770
  %v808 = vpack.c.bf16 %v782, %v778
  %v809 = vpack.c.bf16 %v784, %v780
  %v810 = vpack.c.bf16 %v792, %v788
  %v811 = vpack.c.bf16 %v794, %v790
  %v812 = vld [vmem:[%s6] sm:$0x3]
  %v815 = vunpack.c.l.s4 1966171168
  %v816 = vunpack.c.0.s8 %v815
  %v817 = vlaneseq
  %v818 = vshrl.u32 %v817, 7
  %v819 = vsub.s32 %v816, %v818
  %v820 = vrot.slane %v812, %v819
  %v821 = vcombine.high %v820, %v820
  %v823 = vunpack.c.l.s4 1966171168
  %v824 = vunpack.c.0.s8 %v823
  %v825 = vlaneseq
  %v826 = vshrl.u32 %v825, 7
  %v827 = vsub.s32 %v824, %v826
  %v828 = vrot.slane %v820, %v827
  %v830 = vunpack.c.l.s4 1966171168
  %v831 = vunpack.c.0.s8 %v830
  %v832 = vlaneseq
  %v833 = vshrl.u32 %v832, 7
  %v834 = vsub.s32 %v831, %v833
  %v835 = vrot.slane %v821, %v834
  %v837 = vpack.i.b16 %v828, %v828
  %v839 = vlaneseq
  %v840 = vshrl.u32 %v839, 7
  %v841 = vsub.s32 0, %v840
  %v842 = vrot.slane %v837, %v841
  %v844 = vpack.i.b16 %v835, %v835
  %v846 = vlaneseq
  %v847 = vshrl.u32 %v846, 7
  %v848 = vsub.s32 0, %v847
  %v849 = vrot.slane %v844, %v848
  %v850 = vadd.bf16 %v796, %v842
  %v851 = vadd.bf16 %v797, %v849
  %v852 = vadd.bf16 %v798, %v842
  %v853 = vadd.bf16 %v799, %v849
  %v854 = vadd.bf16 %v800, %v842
  %v855 = vadd.bf16 %v801, %v849
  %v856 = vadd.bf16 %v802, %v842
  %v857 = vadd.bf16 %v803, %v849
  %v858 = vadd.bf16 %v804, %v842
  %v859 = vadd.bf16 %v805, %v849
  %v860 = vadd.bf16 %v806, %v842
  %v861 = vadd.bf16 %v807, %v849
  %v862 = vadd.bf16 %v808, %v842
  %v863 = vadd.bf16 %v809, %v849
  %v864 = vadd.bf16 %v810, %v842
  %v865 = vadd.bf16 %v811, %v849
  %v866 = vmax.bf16 %v850, 0
  %v867 = vmax.bf16 %v851, 0
  %v868 = vmax.bf16 %v852, 0
  %v869 = vmax.bf16 %v853, 0
  %v870 = vmax.bf16 %v854, 0
  %v871 = vmax.bf16 %v855, 0
  %v872 = vmax.bf16 %v856, 0
  %v873 = vmax.bf16 %v857, 0
  %v874 = vmax.bf16 %v858, 0
  %v875 = vmax.bf16 %v859, 0
  %v876 = vmax.bf16 %v860, 0
  %v877 = vmax.bf16 %v861, 0
  %v878 = vmax.bf16 %v862, 0
  %v879 = vmax.bf16 %v863, 0
  %v880 = vmax.bf16 %v864, 0
  %v881 = vmax.bf16 %v865, 0
  %v882 = vld [vmem:[%s7] sm:$0xff]
  %v883 = vld [vmem:[%s7 + $0x8] sm:$0xff]
  %v884 = vld [vmem:[%s7 + $0x10] sm:$0xff]
  %v885 = vld [vmem:[%s7 + $0x18] sm:$0xff]
  %v886 = vld [vmem:[%s7 + $0x20] sm:$0xff]
  %v887 = vld [vmem:[%s7 + $0x28] sm:$0xff]
  %v888 = vld [vmem:[%s7 + $0x30] sm:$0xff]
  %v889 = vld [vmem:[%s7 + $0x38] sm:$0xff]
  %v890 = vld [vmem:[%s7 + $0x40] sm:$0xff]
  %v891 = vld [vmem:[%s7 + $0x48] sm:$0xff]
  %v892 = vld [vmem:[%s7 + $0x50] sm:$0xff]
  %v893 = vld [vmem:[%s7 + $0x58] sm:$0xff]
  %v894 = vld [vmem:[%s7 + $0x60] sm:$0xff]
  %v895 = vld [vmem:[%s7 + $0x68] sm:$0xff]
  %v896 = vld [vmem:[%s7 + $0x70] sm:$0xff]
  %v897 = vld [vmem:[%s7 + $0x78] sm:$0xff]
  %v898 = vld [vmem:[%s7 + $0x80] sm:$0xff]
  %v899 = vld [vmem:[%s7 + $0x88] sm:$0xff]
  %v900 = vld [vmem:[%s7 + $0x90] sm:$0xff]
  %v901 = vld [vmem:[%s7 + $0x98] sm:$0xff]
  %v902 = vld [vmem:[%s7 + $0xa0] sm:$0xff]
  %v903 = vld [vmem:[%s7 + $0xa8] sm:$0xff]
  %v904 = vld [vmem:[%s7 + $0xb0] sm:$0xff]
  %v905 = vld [vmem:[%s7 + $0xb8] sm:$0xff]
  %v906 = vld [vmem:[%s7 + $0xc0] sm:$0xff]
  %v907 = vld [vmem:[%s7 + $0xc8] sm:$0xff]
  %v908 = vld [vmem:[%s7 + $0xd0] sm:$0xff]
  %v909 = vld [vmem:[%s7 + $0xd8] sm:$0xff]
  %v910 = vld [vmem:[%s7 + $0xe0] sm:$0xff]
  %v911 = vld [vmem:[%s7 + $0xe8] sm:$0xff]
  %v912 = vld [vmem:[%s7 + $0xf0] sm:$0xff]
  %v913 = vld [vmem:[%s7 + $0xf8] sm:$0xff]
  %v946 = vunpack.c.l.b16 %v882
  %v947 = vunpack.c.h.b16 %v882
  %v948 = vunpack.c.l.b16 %v883
  %v949 = vunpack.c.h.b16 %v883
  %v950 = vunpack.c.l.b16 %v884
  %v951 = vunpack.c.h.b16 %v884
  %v952 = vunpack.c.l.b16 %v885
  %v953 = vunpack.c.h.b16 %v885
  %v954 = vunpack.c.l.b16 %v886
  %v955 = vunpack.c.h.b16 %v886
  %v956 = vunpack.c.l.b16 %v887
  %v957 = vunpack.c.h.b16 %v887
  %v958 = vunpack.c.l.b16 %v888
  %v959 = vunpack.c.h.b16 %v888
  %v960 = vunpack.c.l.b16 %v889
  %v961 = vunpack.c.h.b16 %v889
  %v962 = vunpack.c.l.b16 %v890
  %v963 = vunpack.c.h.b16 %v890
  %v964 = vunpack.c.l.b16 %v891
  %v965 = vunpack.c.h.b16 %v891
  %v966 = vunpack.c.l.b16 %v892
  %v967 = vunpack.c.h.b16 %v892
  %v968 = vunpack.c.l.b16 %v893
  %v969 = vunpack.c.h.b16 %v893
  %v970 = vunpack.c.l.b16 %v894
  %v971 = vunpack.c.h.b16 %v894
  %v972 = vunpack.c.l.b16 %v895
  %v973 = vunpack.c.h.b16 %v895
  %v974 = vunpack.c.l.b16 %v896
  %v975 = vunpack.c.h.b16 %v896
  %v976 = vunpack.c.l.b16 %v897
  %v977 = vunpack.c.h.b16 %v897
  %v978 = vunpack.c.l.b16 %v898
  %v979 = vunpack.c.h.b16 %v898
  %v980 = vunpack.c.l.b16 %v899
  %v981 = vunpack.c.h.b16 %v899
  %v982 = vunpack.c.l.b16 %v900
  %v983 = vunpack.c.h.b16 %v900
  %v984 = vunpack.c.l.b16 %v901
  %v985 = vunpack.c.h.b16 %v901
  %v986 = vunpack.c.l.b16 %v902
  %v987 = vunpack.c.h.b16 %v902
  %v988 = vunpack.c.l.b16 %v903
  %v989 = vunpack.c.h.b16 %v903
  %v990 = vunpack.c.l.b16 %v904
  %v991 = vunpack.c.h.b16 %v904
  %v992 = vunpack.c.l.b16 %v905
  %v993 = vunpack.c.h.b16 %v905
  %v994 = vunpack.c.l.b16 %v906
  %v995 = vunpack.c.h.b16 %v906
  %v996 = vunpack.c.l.b16 %v907
  %v997 = vunpack.c.h.b16 %v907
  %v998 = vunpack.c.l.b16 %v908
  %v999 = vunpack.c.h.b16 %v908
  %v1000 = vunpack.c.l.b16 %v909
  %v1001 = vunpack.c.h.b16 %v909
  %v1002 = vunpack.c.l.b16 %v910
  %v1003 = vunpack.c.h.b16 %v910
  %v1004 = vunpack.c.l.b16 %v911
  %v1005 = vunpack.c.h.b16 %v911
  %v1006 = vunpack.c.l.b16 %v912
  %v1007 = vunpack.c.h.b16 %v912
  %v1008 = vunpack.c.l.b16 %v913
  %v1009 = vunpack.c.h.b16 %v913
  %v1010 = vpack.c.b16 %v948, %v946
  %v1011 = vpack.c.b16 %v949, %v947
  %v1012 = vpack.c.b16 %v952, %v950
  %v1013 = vpack.c.b16 %v953, %v951
  %v1014 = vpack.c.b16 %v956, %v954
  %v1015 = vpack.c.b16 %v957, %v955
  %v1016 = vpack.c.b16 %v960, %v958
  %v1017 = vpack.c.b16 %v961, %v959
  %v1018 = vpack.c.b16 %v964, %v962
  %v1019 = vpack.c.b16 %v965, %v963
  %v1020 = vpack.c.b16 %v968, %v966
  %v1021 = vpack.c.b16 %v969, %v967
  %v1022 = vpack.c.b16 %v972, %v970
  %v1023 = vpack.c.b16 %v973, %v971
  %v1024 = vpack.c.b16 %v976, %v974
  %v1025 = vpack.c.b16 %v977, %v975
  %v1026 = vpack.c.b16 %v980, %v978
  %v1027 = vpack.c.b16 %v981, %v979
  %v1028 = vpack.c.b16 %v984, %v982
  %v1029 = vpack.c.b16 %v985, %v983
  %v1030 = vpack.c.b16 %v988, %v986
  %v1031 = vpack.c.b16 %v989, %v987
  %v1032 = vpack.c.b16 %v992, %v990
  %v1033 = vpack.c.b16 %v993, %v991
  %v1034 = vpack.c.b16 %v996, %v994
  %v1035 = vpack.c.b16 %v997, %v995
  %v1036 = vpack.c.b16 %v1000, %v998
  %v1037 = vpack.c.b16 %v1001, %v999
  %v1038 = vpack.c.b16 %v1004, %v1002
  %v1039 = vpack.c.b16 %v1005, %v1003
  %v1040 = vpack.c.b16 %v1008, %v1006
  %v1041 = vpack.c.b16 %v1009, %v1007
  %1074 = vmatprep.subr.bf16.mxu0 %v1011
  %1075 = vmatpush1.bf16.msra.mxu0 %v1010
  %1076 = vmatprep.subr.bf16.mxu0 %v1013
  %1077 = vmatpush1.bf16.msra.mxu0 %v1012
  %1078 = vmatprep.subr.bf16.mxu0 %v1015
  %1079 = vmatpush1.bf16.msra.mxu0 %v1014
  %1080 = vmatprep.subr.bf16.mxu0 %v1017
  %1081 = vmatpush1.bf16.msra.mxu0 %v1016
  %1082 = vmatprep.subr.bf16.mxu0 %v1019
  %1083 = vmatpush1.bf16.msra.mxu0 %v1018
  %1084 = vmatprep.subr.bf16.mxu0 %v1021
  %1085 = vmatpush1.bf16.msra.mxu0 %v1020
  %1086 = vmatprep.subr.bf16.mxu0 %v1023
  %1087 = vmatpush1.bf16.msra.mxu0 %v1022
  %1088 = vmatprep.subr.bf16.mxu0 %v1025
  %1089 = vmatpush1.bf16.msra.mxu0 %v1024
  %1090 = vmatprep.subr.bf16.mxu0 %v1027
  %1091 = vmatpush1.bf16.msra.mxu0 %v1026
  %1092 = vmatprep.subr.bf16.mxu0 %v1029
  %1093 = vmatpush1.bf16.msra.mxu0 %v1028
  %1094 = vmatprep.subr.bf16.mxu0 %v1031
  %1095 = vmatpush1.bf16.msra.mxu0 %v1030
  %1096 = vmatprep.subr.bf16.mxu0 %v1033
  %1097 = vmatpush1.bf16.msra.mxu0 %v1032
  %1098 = vmatprep.subr.bf16.mxu0 %v1035
  %1099 = vmatpush1.bf16.msra.mxu0 %v1034
  %1100 = vmatprep.subr.bf16.mxu0 %v1037
  %1101 = vmatpush1.bf16.msra.mxu0 %v1036
  %1102 = vmatprep.subr.bf16.mxu0 %v1039
  %1103 = vmatpush1.bf16.msra.mxu0 %v1038
  %1104 = vmatprep.subr.bf16.mxu0 %v1041
  %1105 = vmatpush1.bf16.msra.mxu0 %v1040
  %1106 = vmatprep.mubr.bf16.mxu0 %v867
  %1107 = vmatmul.mubr.bf16.gmra.mrb[0].mxu0 %v866
  %v1108 = vpop.f32.mrb[0].mxu0
  %v1109 = vadd.f32 0.0, %v1108
  %v1110 = vpop.f32.mrb[0].mxu0
  %v1111 = vadd.f32 0.0, %v1110
  %v1112 = vpop.f32.mrb[0].mxu0
  %v1113 = vadd.f32 0.0, %v1112
  %v1114 = vpop.f32.mrb[0].mxu0
  %v1115 = vadd.f32 0.0, %v1114
  %1116 = vmatprep.mubr.bf16.mxu0 %v869
  %1117 = vmatmul.mubr.bf16.gmra.mrb[0].mxu0 %v868
  %v1118 = vpop.f32.mrb[0].mxu0
  %v1119 = vadd.f32 0.0, %v1118
  %v1120 = vpop.f32.mrb[0].mxu0
  %v1121 = vadd.f32 0.0, %v1120
  %v1122 = vpop.f32.mrb[0].mxu0
  %v1123 = vadd.f32 0.0, %v1122
  %v1124 = vpop.f32.mrb[0].mxu0
  %v1125 = vadd.f32 0.0, %v1124
  %1126 = vmatprep.mubr.bf16.mxu0 %v871
  %1127 = vmatmul.mubr.bf16.gmra.mrb[0].mxu0 %v870
  %v1128 = vpop.f32.mrb[0].mxu0
  %v1129 = vadd.f32 0.0, %v1128
  %v1130 = vpop.f32.mrb[0].mxu0
  %v1131 = vadd.f32 0.0, %v1130
  %v1132 = vpop.f32.mrb[0].mxu0
  %v1133 = vadd.f32 0.0, %v1132
  %v1134 = vpop.f32.mrb[0].mxu0
  %v1135 = vadd.f32 0.0, %v1134
  %1136 = vmatprep.mubr.bf16.mxu0 %v873
  %1137 = vmatmul.mubr.bf16.gmra.mrb[0].mxu0 %v872
  %v1138 = vpop.f32.mrb[0].mxu0
  %v1139 = vadd.f32 0.0, %v1138
  %v1140 = vpop.f32.mrb[0].mxu0
  %v1141 = vadd.f32 0.0, %v1140
  %v1142 = vpop.f32.mrb[0].mxu0
  %v1143 = vadd.f32 0.0, %v1142
  %v1144 = vpop.f32.mrb[0].mxu0
  %v1145 = vadd.f32 0.0, %v1144
  %1146 = vmatprep.mubr.bf16.mxu0 %v875
  %1147 = vmatmul.mubr.bf16.gmra.mrb[0].mxu0 %v874
  %v1148 = vpop.f32.mrb[0].mxu0
  %v1149 = vadd.f32 0.0, %v1148
  %v1150 = vpop.f32.mrb[0].mxu0
  %v1151 = vadd.f32 0.0, %v1150
  %v1152 = vpop.f32.mrb[0].mxu0
  %v1153 = vadd.f32 0.0, %v1152
  %v1154 = vpop.f32.mrb[0].mxu0
  %v1155 = vadd.f32 0.0, %v1154
  %1156 = vmatprep.mubr.bf16.mxu0 %v877
  %1157 = vmatmul.mubr.bf16.gmra.mrb[0].mxu0 %v876
  %v1158 = vpop.f32.mrb[0].mxu0
  %v1159 = vadd.f32 0.0, %v1158
  %v1160 = vpop.f32.mrb[0].mxu0
  %v1161 = vadd.f32 0.0, %v1160
  %v1162 = vpop.f32.mrb[0].mxu0
  %v1163 = vadd.f32 0.0, %v1162
  %v1164 = vpop.f32.mrb[0].mxu0
  %v1165 = vadd.f32 0.0, %v1164
  %1166 = vmatprep.mubr.bf16.mxu0 %v879
  %1167 = vmatmul.mubr.bf16.gmra.mrb[0].mxu0 %v878
  %v1168 = vpop.f32.mrb[0].mxu0
  %v1169 = vadd.f32 0.0, %v1168
  %v1170 = vpop.f32.mrb[0].mxu0
  %v1171 = vadd.f32 0.0, %v1170
  %v1172 = vpop.f32.mrb[0].mxu0
  %v1173 = vadd.f32 0.0, %v1172
  %v1174 = vpop.f32.mrb[0].mxu0
  %v1175 = vadd.f32 0.0, %v1174
  %1176 = vmatprep.mubr.bf16.mxu0 %v881
  %1177 = vmatmul.mubr.bf16.gmra.mrb[0].mxu0 %v880
  %v1178 = vpop.f32.mrb[0].mxu0
  %v1179 = vadd.f32 0.0, %v1178
  %v1180 = vpop.f32.mrb[0].mxu0
  %v1181 = vadd.f32 0.0, %v1180
  %v1182 = vpop.f32.mrb[0].mxu0
  %v1183 = vadd.f32 0.0, %v1182
  %v1184 = vpop.f32.mrb[0].mxu0
  %v1185 = vadd.f32 0.0, %v1184
  %1186 = vdwg.mxu0
  %v1187 = vpack.c.bf16 %v1113, %v1109
  %v1188 = vpack.c.bf16 %v1115, %v1111
  %v1189 = vpack.c.bf16 %v1123, %v1119
  %v1190 = vpack.c.bf16 %v1125, %v1121
  %v1191 = vpack.c.bf16 %v1133, %v1129
  %v1192 = vpack.c.bf16 %v1135, %v1131
  %v1193 = vpack.c.bf16 %v1143, %v1139
  %v1194 = vpack.c.bf16 %v1145, %v1141
  %v1195 = vpack.c.bf16 %v1153, %v1149
  %v1196 = vpack.c.bf16 %v1155, %v1151
  %v1197 = vpack.c.bf16 %v1163, %v1159
  %v1198 = vpack.c.bf16 %v1165, %v1161
  %v1199 = vpack.c.bf16 %v1173, %v1169
  %v1200 = vpack.c.bf16 %v1175, %v1171
  %v1201 = vpack.c.bf16 %v1183, %v1179
  %v1202 = vpack.c.bf16 %v1185, %v1181
  %v1203 = vld [vmem:[%s8] sm:$0x3]
  %v1206 = vunpack.c.l.s4 1966171168
  %v1207 = vunpack.c.0.s8 %v1206
  %v1208 = vlaneseq
  %v1209 = vshrl.u32 %v1208, 7
  %v1210 = vsub.s32 %v1207, %v1209
  %v1211 = vrot.slane %v1203, %v1210
  %v1212 = vcombine.high %v1211, %v1211
  %v1214 = vunpack.c.l.s4 1966171168
  %v1215 = vunpack.c.0.s8 %v1214
  %v1216 = vlaneseq
  %v1217 = vshrl.u32 %v1216, 7
  %v1218 = vsub.s32 %v1215, %v1217
  %v1219 = vrot.slane %v1211, %v1218
  %v1221 = vunpack.c.l.s4 1966171168
  %v1222 = vunpack.c.0.s8 %v1221
  %v1223 = vlaneseq
  %v1224 = vshrl.u32 %v1223, 7
  %v1225 = vsub.s32 %v1222, %v1224
  %v1226 = vrot.slane %v1212, %v1225
  %v1228 = vpack.i.b16 %v1219, %v1219
  %v1230 = vlaneseq
  %v1231 = vshrl.u32 %v1230, 7
  %v1232 = vsub.s32 0, %v1231
  %v1233 = vrot.slane %v1228, %v1232
  %v1235 = vpack.i.b16 %v1226, %v1226
  %v1237 = vlaneseq
  %v1238 = vshrl.u32 %v1237, 7
  %v1239 = vsub.s32 0, %v1238
  %v1240 = vrot.slane %v1235, %v1239
  %v1241 = vadd.bf16 %v1187, %v1233
  %v1242 = vadd.bf16 %v1188, %v1240
  %v1243 = vadd.bf16 %v1189, %v1233
  %v1244 = vadd.bf16 %v1190, %v1240
  %v1245 = vadd.bf16 %v1191, %v1233
  %v1246 = vadd.bf16 %v1192, %v1240
  %v1247 = vadd.bf16 %v1193, %v1233
  %v1248 = vadd.bf16 %v1194, %v1240
  %v1249 = vadd.bf16 %v1195, %v1233
  %v1250 = vadd.bf16 %v1196, %v1240
  %v1251 = vadd.bf16 %v1197, %v1233
  %v1252 = vadd.bf16 %v1198, %v1240
  %v1253 = vadd.bf16 %v1199, %v1233
  %v1254 = vadd.bf16 %v1200, %v1240
  %v1255 = vadd.bf16 %v1201, %v1233
  %v1256 = vadd.bf16 %v1202, %v1240
  %v1257 = vmax.bf16 %v1241, 0
  %v1258 = vmax.bf16 %v1242, 0
  %v1259 = vmax.bf16 %v1243, 0
  %v1260 = vmax.bf16 %v1244, 0
  %v1261 = vmax.bf16 %v1245, 0
  %v1262 = vmax.bf16 %v1246, 0
  %v1263 = vmax.bf16 %v1247, 0
  %v1264 = vmax.bf16 %v1248, 0
  %v1265 = vmax.bf16 %v1249, 0
  %v1266 = vmax.bf16 %v1250, 0
  %v1267 = vmax.bf16 %v1251, 0
  %v1268 = vmax.bf16 %v1252, 0
  %v1269 = vmax.bf16 %v1253, 0
  %v1270 = vmax.bf16 %v1254, 0
  %v1271 = vmax.bf16 %v1255, 0
  %v1272 = vmax.bf16 %v1256, 0
  %v1273 = vld [vmem:[%s9] sm:$0x3]
  %v1274 = vld [vmem:[#allocation2] sm:$0x1]
  %1276 = vset.pattern.permute.xlu0 0
  %1277 = vperm.xlu0 %1276, %v1274
  %v1278 = vpop.permute.xlu0 %1277
  %v1280 = vlaneseq
  %v1281 = vshrl.u32 %v1280, 7
  %v1282 = vsub.s32 0, %v1281
  %v1283 = vrot.slane %v1278, %v1282
  %v1286 = vunpack.c.l.s4 1966171168
  %v1287 = vunpack.c.0.s8 %v1286
  %v1288 = vlaneseq
  %v1289 = vshrl.u32 %v1288, 7
  %v1290 = vsub.s32 %v1287, %v1289
  %v1291 = vrot.slane %v1273, %v1290
  %v1292 = vcombine.high %v1291, %v1291
  %v1294 = vunpack.c.l.s4 1966171168
  %v1295 = vunpack.c.0.s8 %v1294
  %v1296 = vlaneseq
  %v1297 = vshrl.u32 %v1296, 7
  %v1298 = vsub.s32 %v1295, %v1297
  %v1299 = vrot.slane %v1291, %v1298
  %v1301 = vunpack.c.l.s4 1966171168
  %v1302 = vunpack.c.0.s8 %v1301
  %v1303 = vlaneseq
  %v1304 = vshrl.u32 %v1303, 7
  %v1305 = vsub.s32 %v1302, %v1304
  %v1306 = vrot.slane %v1292, %v1305
  %1309 = vmatprep.subr.bf16.mxu0 %v1258
  %1310 = vmatpush1.bf16.xpose.msra.mxu0 %v1257
  %1311 = vmatprep.subr.bf16.mxu0 %v1260
  %1312 = vmatpush1.bf16.xpose.msra.mxu0 %v1259
  %1313 = vmatprep.subr.bf16.mxu0 %v1262
  %1314 = vmatpush1.bf16.xpose.msra.mxu0 %v1261
  %1315 = vmatprep.subr.bf16.mxu0 %v1264
  %1316 = vmatpush1.bf16.xpose.msra.mxu0 %v1263
  %1317 = vmatprep.subr.bf16.mxu0 %v1266
  %1318 = vmatpush1.bf16.xpose.msra.mxu0 %v1265
  %1319 = vmatprep.subr.bf16.mxu0 %v1268
  %1320 = vmatpush1.bf16.xpose.msra.mxu0 %v1267
  %1321 = vmatprep.subr.bf16.mxu0 %v1270
  %1322 = vmatpush1.bf16.xpose.msra.mxu0 %v1269
  %1323 = vmatprep.subr.bf16.mxu0 %v1272
  %1324 = vmatpush1.bf16.xpose.msra.mxu0 %v1271
  %1325 = vmatprep.subr.bf16.mxu0 0
  %1326 = vmatpush1.bf16.xpose.msra.mxu0 0
  %1327 = vmatprep.subr.bf16.mxu0 0
  %1328 = vmatpush1.bf16.xpose.msra.mxu0 0
  %1329 = vmatprep.subr.bf16.mxu0 0
  %1330 = vmatpush1.bf16.xpose.msra.mxu0 0
  %1331 = vmatprep.subr.bf16.mxu0 0
  %1332 = vmatpush1.bf16.xpose.msra.mxu0 0
  %1333 = vmatprep.subr.bf16.mxu0 0
  %1334 = vmatpush1.bf16.xpose.msra.mxu0 0
  %1335 = vmatprep.subr.bf16.mxu0 0
  %1336 = vmatpush1.bf16.xpose.msra.mxu0 0
  %1337 = vmatprep.subr.bf16.mxu0 0
  %1338 = vmatpush1.bf16.xpose.msra.mxu0 0
  %1339 = vmatprep.subr.bf16.mxu0 0
  %1340 = vmatpush1.bf16.xpose.msra.mxu0 0
  %1341 = vmatprep.mubr.bf16.mxu0 %v1306
  %1342 = vmatmul.mubr.bf16.gmra.mrb[0].mxu0 %v1299
  %v1343 = vpop.f32.mrb[0].mxu0
  %v1344 = vadd.f32 %v1283, %v1343
  %v1345 = vpop.f32.mrb[0].mxu0
  %v1346 = vpop.f32.mrb[0].mxu0
  %v1347 = vpop.f32.mrb[0].mxu0
  %1348 = vdwg.mxu0
  %1349 = vst [vmem:[%s11] sm:$0x1] %v1344
  // Predicated region
  $region46: #{fully_connected_q_forward.1} parent=0 // pred_check
    _
  $region47: #{fully_connected_q_forward.1} parent=0 // pred_check_branch
    %1351 = sbr.rel (0) target = $region49
  $region48: #{fully_connected_q_forward.1} parent=0 // pred_region
    _
  $region49: #{fully_connected_q_forward.1} parent=0 // pred_fallthru
    _
  // Predicated region
  $region50: #{fully_connected_q_forward.1} parent=0 // pred_check
    _
  $region51: #{fully_connected_q_forward.1} parent=0 // pred_check_branch
    %1353 = sbr.rel (0) target = $region53
  $region52: #{fully_connected_q_forward.1} parent=0 // pred_region
    _
  $region53: #{fully_connected_q_forward.1} parent=0 // pred_fallthru
    _

</llo_original>
